<compile_context>
chip_gen: v5e
topology: v5e:2x2
jax: 0.10.0
libtpu: 0.0.40
codegen_flags: <defaults>
</compile_context>

<pallas_src>
import functools

import jax
import jax.numpy as jnp
from jax import lax
from jax.experimental import pallas as pl
from jax.experimental.pallas import tpu as pltpu

BN_EPS = 1e-5
LAMBD = 0.005


def barlow_twins_fused_kernel(x_ref, w1_ref, w2_ref, w3_ref, o_ref,
                              *, batch_size, lambd):
    B = batch_size  # static python int

    def linear(x, w_ref):
        # bf16 operands on the MXU, f32 accumulation. The in-kernel weight cast
        # runs on the VPU under the MXU (free slot); BN renormalizes every
        # layer so bf16 inputs are numerically benign.
        return jnp.dot(x.astype(jnp.bfloat16),
                       w_ref[...].astype(jnp.bfloat16),
                       preferred_element_type=jnp.float32)

    def bn_per_view(h):
        # BatchNorm1d training-mode batch stats, computed independently for
        # each view (the two B-row blocks), in f32. Biased variance, eps=1e-5.
        h3 = h.reshape(2, B, h.shape[-1])
        mean = jnp.mean(h3, axis=1, keepdims=True)
        var = jnp.mean((h3 - mean) ** 2, axis=1, keepdims=True)
        return (h3 - mean) * lax.rsqrt(var + BN_EPS)

    # x_ref is the pre-stacked (2B, feat) activation (view stacking done in the
    # wrapper so it folds into the input DMA).
    x = x_ref[...]
    h = jnp.maximum(bn_per_view(linear(x, w1_ref)), 0.0).reshape(2 * B, -1)
    h = jnp.maximum(bn_per_view(linear(h, w2_ref)), 0.0).reshape(2 * B, -1)
    z = linear(h, w3_ref)                                              # (2B, F) f32

    # ---- headless Barlow Twins loss ----
    zn = bn_per_view(z)                                                # (2, B, F)
    z1b = zn[0].astype(jnp.bfloat16)                                   # (B, F)
    z2b = zn[1].astype(jnp.bfloat16)                                   # (B, F)
    inv_b = 1.0 / batch_size

    # c = BN(z1).T @ BN(z2) / batch_size, contracting over the batch dim.
    # bf16 operands, f32 accumulation (single-pass MXU path).
    c = lax.dot_general(z1b, z2b, (((0,), (0,)), ((), ())),
                        preferred_element_type=jnp.float32) * inv_b    # (F, F)

    # diag(c) analytically from the same bf16 operands (consistent with the MXU
    # result up to accumulation order) -> no FxF iota/compare/select masking.
    diag_c = jnp.sum(z1b.astype(jnp.float32) * z2b.astype(jnp.float32),
                     axis=0, keepdims=True) * inv_b                    # (1, F)
    total_sq = jnp.sum(c * c)
    on_diag_sum = jnp.sum((diag_c - 1.0) ** 2)
    off_diag_sum = total_sq - jnp.sum(diag_c * diag_c)

    F = c.shape[-1]
    # final_reduction == 'mean_on_diag':
    #   loss = on_diag.mean() + lambd * off_diag.sum() / n,   n = F
    loss = on_diag_sum / F + lambd * (off_diag_sum / F)
    o_ref[0, 0] = loss


def barlow_twins_loss(y1, y2, weights, *, lambd=LAMBD):
    """Fused projector(y1), projector(y2) and BT loss in one pallas_call.

    Weights are stored (in_features, out_features), i.e. torch weight.T,
    and stay f32 in HBM (cast to bf16 inside the kernel).
    """
    w1, w2, w3 = weights
    B, FEAT = y1.shape                 # batch_size=None -> z1.shape[0] (torch)
    HID1 = w1.shape[1]
    HID2 = w2.shape[1]
    F = w3.shape[1]

    # Stack the two views on the row axis in the wrapper (folds into input DMA).
    x = jnp.concatenate([y1, y2], axis=0)                              # (2B, FEAT)

    flops = 2 * (2 * B * FEAT * HID1          # layer 1
                 + 2 * B * HID1 * HID2        # layer 2
                 + 2 * B * HID2 * F           # layer 3
                 + B * F * F)                 # correlation
    transcendentals = 2 * (HID1 + HID2 + F)   # rsqrt per-view per-feature
    bytes_accessed = 4 * (2 * B * FEAT + FEAT * HID1 + HID1 * HID2
                          + HID2 * F) + 4

    kernel = functools.partial(barlow_twins_fused_kernel,
                               batch_size=int(B), lambd=float(lambd))
    loss = pl.pallas_call(
        kernel,
        out_shape=jax.ShapeDtypeStruct((1, 1), jnp.float32),
        out_specs=pl.BlockSpec(memory_space=pltpu.MemorySpace.SMEM),
        cost_estimate=pl.CostEstimate(flops=flops,
                                      transcendentals=transcendentals,
                                      bytes_accessed=bytes_accessed),
    )(x, w1, w2, w3)
    return loss[0, 0]


if __name__ == "__main__":
    # Small shapes consistent with the module: feature_size=32, layers 3*[128].
    # 2B = 16 keeps the (2B,F)<->(2,B,F) reshapes sublane-aligned (f32 pack 8).
    B, FEAT, HID = 8, 32, 128
    key = jax.random.PRNGKey(0)
    k1, k2, k3, k4, k5 = jax.random.split(key, 5)

    y1 = jax.random.normal(k1, (B, FEAT), jnp.float32)
    y2 = jax.random.normal(k2, (B, FEAT), jnp.float32)

    # Deterministic synthetic weights, stored (in, out) = torch weight.T
    w1 = jax.random.normal(k3, (FEAT, HID), jnp.float32) * 0.05
    w2 = jax.random.normal(k4, (HID, HID), jnp.float32) * 0.05
    w3 = jax.random.normal(k5, (HID, HID), jnp.float32) * 0.05

    loss = jax.jit(barlow_twins_loss)(y1, y2, (w1, w2, w3))
    jax.block_until_ready(loss)
    print("KERNEL_OK")
</pallas_src>

<mosaic_0001>
module attributes {stable_mosaic.version = 11 : i64} {
  func.func @barlow_twins_fused_kernel(%arg0: memref<16x32xf32, #tpu.memory_space<vmem>>, %arg1: memref<32x128xf32, #tpu.memory_space<vmem>>, %arg2: memref<128x128xf32, #tpu.memory_space<vmem>>, %arg3: memref<128x128xf32, #tpu.memory_space<vmem>>, %arg4: memref<1x1xf32, #tpu.memory_space<smem>>) attributes {dimension_semantics = [], scalar_prefetch = 0 : i64, scratch_operands = 0 : i64, tpu.core_type = #tpu.core_type<tc>} {
    %c0 = arith.constant 0 : index
    %c0_0 = arith.constant 0 : index
    %0 = vector.load %arg0[%c0, %c0_0] : memref<16x32xf32, #tpu.memory_space<vmem>>, vector<16x32xf32>
    %1 = arith.truncf %0 : vector<16x32xf32> to vector<16x32xbf16>
    %c0_1 = arith.constant 0 : index
    %c0_2 = arith.constant 0 : index
    %2 = vector.load %arg1[%c0_1, %c0_2] : memref<32x128xf32, #tpu.memory_space<vmem>>, vector<32x128xf32>
    %3 = arith.truncf %2 : vector<32x128xf32> to vector<32x128xbf16>
    %cst = arith.constant dense<0.000000e+00> : vector<16x128xf32>
    %4 = tpu.matmul %1, %3, %cst {dimension_numbers = #tpu.dot_dimension_numbers<[1], [0], [0], [1], [0, 0, 1, 1], [], []>} : vector<16x32xbf16>, vector<32x128xbf16>, vector<16x128xf32> -> vector<16x128xf32>
    %5 = vector.shape_cast %4 : vector<16x128xf32> to vector<2x8x128xf32>
    %cst_3 = arith.constant dense<0.000000e+00> : vector<2x128xf32>
    %6 = vector.multi_reduction <add>, %5, %cst_3 [1] : vector<2x8x128xf32> to vector<2x128xf32>
    %7 = vector.shape_cast %6 : vector<2x128xf32> to vector<2x1x128xf32>
    %cst_4 = arith.constant 8.000000e+00 : f32
    %8 = vector.broadcast %cst_4 : f32 to vector<2x1x128xf32>
    %9 = arith.divf %7, %8 : vector<2x1x128xf32>
    %10 = vector.broadcast %9 : vector<2x1x128xf32> to vector<2x8x128xf32>
    %11 = arith.subf %5, %10 : vector<2x8x128xf32>
    %12 = arith.mulf %11, %11 : vector<2x8x128xf32>
    %cst_5 = arith.constant dense<0.000000e+00> : vector<2x128xf32>
    %13 = vector.multi_reduction <add>, %12, %cst_5 [1] : vector<2x8x128xf32> to vector<2x128xf32>
    %14 = vector.shape_cast %13 : vector<2x128xf32> to vector<2x1x128xf32>
    %cst_6 = arith.constant 8.000000e+00 : f32
    %15 = vector.broadcast %cst_6 : f32 to vector<2x1x128xf32>
    %16 = arith.divf %14, %15 : vector<2x1x128xf32>
    %17 = vector.broadcast %9 : vector<2x1x128xf32> to vector<2x8x128xf32>
    %18 = arith.subf %5, %17 : vector<2x8x128xf32>
    %cst_7 = arith.constant 9.99999974E-6 : f32
    %19 = vector.broadcast %cst_7 : f32 to vector<2x1x128xf32>
    %20 = arith.addf %16, %19 : vector<2x1x128xf32>
    %21 = math.rsqrt %20 : vector<2x1x128xf32>
    %22 = vector.broadcast %21 : vector<2x1x128xf32> to vector<2x8x128xf32>
    %23 = arith.mulf %18, %22 : vector<2x8x128xf32>
    %cst_8 = arith.constant 0.000000e+00 : f32
    %24 = vector.broadcast %cst_8 : f32 to vector<2x8x128xf32>
    %25 = arith.maximumf %23, %24 : vector<2x8x128xf32>
    %26 = vector.shape_cast %25 : vector<2x8x128xf32> to vector<16x128xf32>
    %27 = arith.truncf %26 : vector<16x128xf32> to vector<16x128xbf16>
    %c0_9 = arith.constant 0 : index
    %c0_10 = arith.constant 0 : index
    %28 = vector.load %arg2[%c0_9, %c0_10] : memref<128x128xf32, #tpu.memory_space<vmem>>, vector<128x128xf32>
    %29 = arith.truncf %28 : vector<128x128xf32> to vector<128x128xbf16>
    %cst_11 = arith.constant dense<0.000000e+00> : vector<16x128xf32>
    %30 = tpu.matmul %27, %29, %cst_11 {dimension_numbers = #tpu.dot_dimension_numbers<[1], [0], [0], [1], [0, 0, 1, 1], [], []>} : vector<16x128xbf16>, vector<128x128xbf16>, vector<16x128xf32> -> vector<16x128xf32>
    %31 = vector.shape_cast %30 : vector<16x128xf32> to vector<2x8x128xf32>
    %cst_12 = arith.constant dense<0.000000e+00> : vector<2x128xf32>
    %32 = vector.multi_reduction <add>, %31, %cst_12 [1] : vector<2x8x128xf32> to vector<2x128xf32>
    %33 = vector.shape_cast %32 : vector<2x128xf32> to vector<2x1x128xf32>
    %cst_13 = arith.constant 8.000000e+00 : f32
    %34 = vector.broadcast %cst_13 : f32 to vector<2x1x128xf32>
    %35 = arith.divf %33, %34 : vector<2x1x128xf32>
    %36 = vector.broadcast %35 : vector<2x1x128xf32> to vector<2x8x128xf32>
    %37 = arith.subf %31, %36 : vector<2x8x128xf32>
    %38 = arith.mulf %37, %37 : vector<2x8x128xf32>
    %cst_14 = arith.constant dense<0.000000e+00> : vector<2x128xf32>
    %39 = vector.multi_reduction <add>, %38, %cst_14 [1] : vector<2x8x128xf32> to vector<2x128xf32>
    %40 = vector.shape_cast %39 : vector<2x128xf32> to vector<2x1x128xf32>
    %cst_15 = arith.constant 8.000000e+00 : f32
    %41 = vector.broadcast %cst_15 : f32 to vector<2x1x128xf32>
    %42 = arith.divf %40, %41 : vector<2x1x128xf32>
    %43 = vector.broadcast %35 : vector<2x1x128xf32> to vector<2x8x128xf32>
    %44 = arith.subf %31, %43 : vector<2x8x128xf32>
    %cst_16 = arith.constant 9.99999974E-6 : f32
    %45 = vector.broadcast %cst_16 : f32 to vector<2x1x128xf32>
    %46 = arith.addf %42, %45 : vector<2x1x128xf32>
    %47 = math.rsqrt %46 : vector<2x1x128xf32>
    %48 = vector.broadcast %47 : vector<2x1x128xf32> to vector<2x8x128xf32>
    %49 = arith.mulf %44, %48 : vector<2x8x128xf32>
    %cst_17 = arith.constant 0.000000e+00 : f32
    %50 = vector.broadcast %cst_17 : f32 to vector<2x8x128xf32>
    %51 = arith.maximumf %49, %50 : vector<2x8x128xf32>
    %52 = vector.shape_cast %51 : vector<2x8x128xf32> to vector<16x128xf32>
    %53 = arith.truncf %52 : vector<16x128xf32> to vector<16x128xbf16>
    %c0_18 = arith.constant 0 : index
    %c0_19 = arith.constant 0 : index
    %54 = vector.load %arg3[%c0_18, %c0_19] : memref<128x128xf32, #tpu.memory_space<vmem>>, vector<128x128xf32>
    %55 = arith.truncf %54 : vector<128x128xf32> to vector<128x128xbf16>
    %cst_20 = arith.constant dense<0.000000e+00> : vector<16x128xf32>
    %56 = tpu.matmul %53, %55, %cst_20 {dimension_numbers = #tpu.dot_dimension_numbers<[1], [0], [0], [1], [0, 0, 1, 1], [], []>} : vector<16x128xbf16>, vector<128x128xbf16>, vector<16x128xf32> -> vector<16x128xf32>
    %57 = vector.shape_cast %56 : vector<16x128xf32> to vector<2x8x128xf32>
    %cst_21 = arith.constant dense<0.000000e+00> : vector<2x128xf32>
    %58 = vector.multi_reduction <add>, %57, %cst_21 [1] : vector<2x8x128xf32> to vector<2x128xf32>
    %59 = vector.shape_cast %58 : vector<2x128xf32> to vector<2x1x128xf32>
    %cst_22 = arith.constant 8.000000e+00 : f32
    %60 = vector.broadcast %cst_22 : f32 to vector<2x1x128xf32>
    %61 = arith.divf %59, %60 : vector<2x1x128xf32>
    %62 = vector.broadcast %61 : vector<2x1x128xf32> to vector<2x8x128xf32>
    %63 = arith.subf %57, %62 : vector<2x8x128xf32>
    %64 = arith.mulf %63, %63 : vector<2x8x128xf32>
    %cst_23 = arith.constant dense<0.000000e+00> : vector<2x128xf32>
    %65 = vector.multi_reduction <add>, %64, %cst_23 [1] : vector<2x8x128xf32> to vector<2x128xf32>
    %66 = vector.shape_cast %65 : vector<2x128xf32> to vector<2x1x128xf32>
    %cst_24 = arith.constant 8.000000e+00 : f32
    %67 = vector.broadcast %cst_24 : f32 to vector<2x1x128xf32>
    %68 = arith.divf %66, %67 : vector<2x1x128xf32>
    %69 = vector.broadcast %61 : vector<2x1x128xf32> to vector<2x8x128xf32>
    %70 = arith.subf %57, %69 : vector<2x8x128xf32>
    %cst_25 = arith.constant 9.99999974E-6 : f32
    %71 = vector.broadcast %cst_25 : f32 to vector<2x1x128xf32>
    %72 = arith.addf %68, %71 : vector<2x1x128xf32>
    %73 = math.rsqrt %72 : vector<2x1x128xf32>
    %74 = vector.broadcast %73 : vector<2x1x128xf32> to vector<2x8x128xf32>
    %75 = arith.mulf %70, %74 : vector<2x8x128xf32>
    %76 = vector.extract_strided_slice %75 {offsets = [0, 0, 0], sizes = [1, 8, 128], strides = [1, 1, 1]} : vector<2x8x128xf32> to vector<1x8x128xf32>
    %77 = vector.shape_cast %76 : vector<1x8x128xf32> to vector<8x128xf32>
    %78 = arith.truncf %77 : vector<8x128xf32> to vector<8x128xbf16>
    %79 = vector.extract_strided_slice %75 {offsets = [1, 0, 0], sizes = [1, 8, 128], strides = [1, 1, 1]} : vector<2x8x128xf32> to vector<1x8x128xf32>
    %80 = vector.shape_cast %79 : vector<1x8x128xf32> to vector<8x128xf32>
    %81 = arith.truncf %80 : vector<8x128xf32> to vector<8x128xbf16>
    %cst_26 = arith.constant dense<0.000000e+00> : vector<128x128xf32>
    %82 = tpu.matmul %78, %81, %cst_26 {dimension_numbers = #tpu.dot_dimension_numbers<[0], [0], [1], [1], [0, 1, 1, 1], [], []>} : vector<8x128xbf16>, vector<8x128xbf16>, vector<128x128xf32> -> vector<128x128xf32>
    %cst_27 = arith.constant 1.250000e-01 : f32
    %83 = vector.broadcast %cst_27 : f32 to vector<128x128xf32>
    %84 = arith.mulf %82, %83 : vector<128x128xf32>
    %85 = arith.extf %78 : vector<8x128xbf16> to vector<8x128xf32>
    %86 = arith.extf %81 : vector<8x128xbf16> to vector<8x128xf32>
    %87 = arith.mulf %85, %86 : vector<8x128xf32>
    %cst_28 = arith.constant dense<0.000000e+00> : vector<128xf32>
    %88 = vector.multi_reduction <add>, %87, %cst_28 [0] : vector<8x128xf32> to vector<128xf32>
    %89 = vector.shape_cast %88 : vector<128xf32> to vector<1x128xf32>
    %cst_29 = arith.constant 1.250000e-01 : f32
    %90 = vector.broadcast %cst_29 : f32 to vector<1x128xf32>
    %91 = arith.mulf %89, %90 : vector<1x128xf32>
    %92 = arith.mulf %84, %84 : vector<128x128xf32>
    %93 = vector.shape_cast %92 : vector<128x128xf32> to vector<1x128x128xf32>
    %cst_30 = arith.constant dense<0.000000e+00> : vector<1xf32>
    %94 = vector.multi_reduction <add>, %93, %cst_30 [1, 2] : vector<1x128x128xf32> to vector<1xf32>
    %95 = vector.shape_cast %94 : vector<1xf32> to vector<1x1x1xf32>
    %96 = vector.extract %95[0, 0, 0] : f32 from vector<1x1x1xf32>
    %cst_31 = arith.constant 1.000000e+00 : f32
    %97 = vector.broadcast %cst_31 : f32 to vector<1x128xf32>
    %98 = arith.subf %91, %97 : vector<1x128xf32>
    %99 = arith.mulf %98, %98 : vector<1x128xf32>
    %100 = vector.shape_cast %99 : vector<1x128xf32> to vector<1x1x128xf32>
    %cst_32 = arith.constant dense<0.000000e+00> : vector<1xf32>
    %101 = vector.multi_reduction <add>, %100, %cst_32 [1, 2] : vector<1x1x128xf32> to vector<1xf32>
    %102 = vector.shape_cast %101 : vector<1xf32> to vector<1x1x1xf32>
    %103 = vector.extract %102[0, 0, 0] : f32 from vector<1x1x1xf32>
    %104 = arith.mulf %91, %91 : vector<1x128xf32>
    %105 = vector.shape_cast %104 : vector<1x128xf32> to vector<1x1x128xf32>
    %cst_33 = arith.constant dense<0.000000e+00> : vector<1xf32>
    %106 = vector.multi_reduction <add>, %105, %cst_33 [1, 2] : vector<1x1x128xf32> to vector<1xf32>
    %107 = vector.shape_cast %106 : vector<1xf32> to vector<1x1x1xf32>
    %108 = vector.extract %107[0, 0, 0] : f32 from vector<1x1x1xf32>
    %109 = arith.subf %96, %108 : f32
    %cst_34 = arith.constant 1.280000e+02 : f32
    %110 = arith.divf %103, %cst_34 : f32
    %cst_35 = arith.constant 1.280000e+02 : f32
    %111 = arith.divf %109, %cst_35 : f32
    %cst_36 = arith.constant 5.000000e-03 : f32
    %112 = arith.mulf %cst_36, %111 : f32
    %113 = arith.addf %110, %112 : f32
    %c0_37 = arith.constant 0 : index
    %c0_38 = arith.constant 0 : index
    %114 = memref.load %arg4[%c0_37, %c0_38] : memref<1x1xf32, #tpu.memory_space<smem>>
    memref.store %113, %arg4[%c0_37, %c0_38] : memref<1x1xf32, #tpu.memory_space<smem>>
    return
  }
}

</mosaic_0001>

<llo_original>
// kernel: barlow_twins_loss.1
$region0: #{barlow_twins_loss.1}
  #allocation0 [shape = 'u32[]', space=smem, size = 0x4, offset = 0x4, fixed_abs, tag = 'smem constant byte address 0x4 - core index']
  #allocation1 [shape = 'u32[72,128]{1,0:T(1,128)}', space=vmem, size = 0x9000, scoped, tag = 'internal scratch']
  %s0 = inlined_call_operand.vmem [shape: f32[16,32], index: 0, kind: input, shape index: {}]
  %s1 = inlined_call_operand.vmem [shape: f32[32,128], index: 1, kind: input, shape index: {}]
  %s2 = inlined_call_operand.hbm [shape: f32[128,128], index: 2, kind: input, shape index: {}]
  %s3 = inlined_call_operand.hbm [shape: f32[128,128], index: 3, kind: input, shape index: {}]
  %s4 = inlined_call_operand.hbm [shape: f32[1,1], index: 4, kind: output, shape index: {}]
  %s5 = sld [smem:[#allocation0]]
  $region34: #{barlow_twins_loss.1} parent=0
    _
  %s7 = ssub.s32 1, %s5
  %s8 = scalar_select 0, %s7, %s5
  $region1: #{barlow_twins_loss.1} parent=0
    #allocation2 [shape = 'u8[65536]{0}', space=vmem, size = 0x10000, scoped, tag = 'input window, operand 2, single buffered']
    #allocation3 [shape = 's32[1]{0}', space=sflag, size = 0x4, scoped, tag = 'scoped memory for barlow_twins_loss.1']
    #allocation4 [shape = 's32[1]{0}', space=sflag, size = 0x4, scoped, tag = 'scoped memory for barlow_twins_loss.1']
    #allocation5 [shape = 'u8[65536]{0}', space=vmem, size = 0x10000, scoped, tag = 'input window, operand 3, single buffered']
    #allocation6 [shape = 's32[1]{0}', space=sflag, size = 0x4, scoped, tag = 'scoped memory for barlow_twins_loss.1']
    #allocation7 [shape = 'u8[512]{0}', space=smem, size = 0x200, scoped, tag = 'output window, operand 0, single buffered']
    %9 = vsyncpa [#allocation3], 0
    %10 = vsyncpa [#allocation6], 0
    %11 = vsyncpa [#allocation4], 0
    // Predicated region
    $region2: #{barlow_twins_loss.1} parent=1 // pred_check
      _
    $region3: #{barlow_twins_loss.1} parent=1 // pred_check_branch
      %13 = sbr.rel (0) target = $region5
    $region4: #{barlow_twins_loss.1} parent=1 // pred_region
      _
    $region5: #{barlow_twins_loss.1} parent=1 // pred_fallthru
      _
    // Predicated region
    $region6: #{barlow_twins_loss.1} parent=1 // pred_check
      _
    $region7: #{barlow_twins_loss.1} parent=1 // pred_check_branch
      %15 = sbr.rel (0) target = $region9
    $region8: #{barlow_twins_loss.1} parent=1 // pred_region
      _
    $region9: #{barlow_twins_loss.1} parent=1 // pred_fallthru
      _
    // Predicated region
    $region10: #{barlow_twins_loss.1} parent=1 // pred_check
      _
    $region11: #{barlow_twins_loss.1} parent=1 // pred_check_branch
      %17 = sbr.rel (0) target = $region13
    $region12: #{barlow_twins_loss.1} parent=1 // pred_region
      %19 = vsyncadd [#allocation3], 0
      %s20 = sshll.u32 %s2, 4
      %s21 = int_to_ptr.hbm [resolvable:$true] %s20
      %s22 = sshll.u32 [#allocation2], 4
      %s23 = int_to_ptr.vmem [resolvable:$true] %s22
      %28 = dma.hbm_to_vmem [thread:$0]  %s21, 2048, %s23, [#allocation3], 128, 128, 8
    $region13: #{barlow_twins_loss.1} parent=1 // pred_fallthru
      _
    // Predicated region
    $region14: #{barlow_twins_loss.1} parent=1 // pred_check
      _
    $region15: #{barlow_twins_loss.1} parent=1 // pred_check_branch
      %30 = sbr.rel (0) target = $region17
    $region16: #{barlow_twins_loss.1} parent=1 // pred_region
      %32 = vsyncadd [#allocation6], 0
      %s33 = sshll.u32 %s3, 4
      %s34 = int_to_ptr.hbm [resolvable:$true] %s33
      %s35 = sshll.u32 [#allocation5], 4
      %s36 = int_to_ptr.vmem [resolvable:$true] %s35
      %41 = dma.hbm_to_vmem [thread:$0]  %s34, 2048, %s36, [#allocation6], 128, 128, 8
    $region17: #{barlow_twins_loss.1} parent=1 // pred_fallthru
      _
    // Predicated region
    $region18: #{barlow_twins_loss.1} parent=1 // pred_check
      _
    $region19: #{barlow_twins_loss.1} parent=1 // pred_check_branch
      %43 = sbr.rel (0) target = $region21
    $region20: #{barlow_twins_loss.1} parent=1 // pred_region
      %45 = dma.done [#allocation3], 2048
    $region21: #{barlow_twins_loss.1} parent=1 // pred_fallthru
      _
    // Predicated region
    $region22: #{barlow_twins_loss.1} parent=1 // pred_check
      _
    $region23: #{barlow_twins_loss.1} parent=1 // pred_check_branch
      %47 = sbr.rel (0) target = $region25
    $region24: #{barlow_twins_loss.1} parent=1 // pred_region
      %49 = dma.done [#allocation6], 2048
    $region25: #{barlow_twins_loss.1} parent=1 // pred_fallthru
      _
    %v51 = vld [vmem:[%s0] sm:$0xff]
    %v52 = vld [vmem:[%s0 + $0x8] sm:$0xff]
    %v53 = vpack.c.bf16 %v52, %v51
    %v54 = vld [vmem:[%s1] sm:$0xff]
    %v55 = vld [vmem:[%s1 + $0x8] sm:$0xff]
    %v56 = vld [vmem:[%s1 + $0x10] sm:$0xff]
    %v57 = vld [vmem:[%s1 + $0x18] sm:$0xff]
    %v58 = vpack.c.bf16 %v55, %v54
    %v59 = vpack.c.bf16 %v57, %v56
    %vm60 = vcmask 261120
    %v62 = vsel %vm60, %v53, 0
    %64 = vmatpush.bf16.msra.mxu0 0
    %65 = vmatpush.bf16.msra.mxu0 0
    %66 = vmatpush.bf16.msra.mxu0 0
    %67 = vmatpush.bf16.msra.mxu0 0
    %68 = vmatpush.bf16.msra.mxu0 0
    %69 = vmatpush.bf16.msra.mxu0 0
    %70 = vmatpush.bf16.msra.mxu0 %v59
    %71 = vmatpush.bf16.msra.mxu0 %v58
    %72 = vmatmul.bf16.gmra.mxu0 %v62
    %v73 = vpop.f32.mrf.mxu0
    %v74 = vadd.f32 0.0, %v73
    %v75 = vpop.f32.mrf.mxu0
    %v76 = vadd.f32 0.0, %v75
    %77 = vdwg.mxu0
    %v78 = vrot.slane %v74, 4
    %v79 = vadd.f32 %v74, %v78
    %v80 = vrot.slane %v79, 2
    %v81 = vadd.f32 %v79, %v80
    %v82 = vrot.slane %v81, 1
    %v83 = vadd.f32 %v81, %v82
    %v84 = vrot.slane %v76, 4
    %v85 = vadd.f32 %v76, %v84
    %v86 = vrot.slane %v85, 2
    %v87 = vadd.f32 %v85, %v86
    %v88 = vrot.slane %v87, 1
    %v89 = vadd.f32 %v87, %v88
    %v90 = vrcp.pop 8.0
    %v91 = vmul.f32 8.0, %v90
    %v92 = vsub.f32 1.0, %v91
    %v93 = vmul.f32 %v90, %v92
    %v94 = vadd.f32 %v90, %v93
    %vm95 = vweird.f32 %v90
    %v96 = vsel %vm95, %v90, %v94
    %v97 = vmul.f32 %v83, %v96
    %v98 = vmul.f32 %v89, %v96
    %v99 = vsub.f32 %v74, %v97
    %v100 = vsub.f32 %v76, %v98
    %v101 = vmul.f32 %v99, %v99
    %v102 = vmul.f32 %v100, %v100
    %v103 = vrot.slane %v101, 4
    %v104 = vadd.f32 %v101, %v103
    %v105 = vrot.slane %v104, 2
    %v106 = vadd.f32 %v104, %v105
    %v107 = vrot.slane %v106, 1
    %v108 = vadd.f32 %v106, %v107
    %v109 = vrot.slane %v102, 4
    %v110 = vadd.f32 %v102, %v109
    %v111 = vrot.slane %v110, 2
    %v112 = vadd.f32 %v110, %v111
    %v113 = vrot.slane %v112, 1
    %v114 = vadd.f32 %v112, %v113
    %v115 = vmul.f32 %v108, %v96
    %v116 = vmul.f32 %v114, %v96
    %v117 = vadd.f32 %v115, 1e-05
    %v118 = vadd.f32 %v116, 1e-05
    %v119 = vrsqrt.pop %v117
    %v120 = vmul.f32 %v119, %v117
    %v121 = vmul.f32 %v120, %v119
    %v122 = vmul.f32 0.5, %v121
    %v123 = vsub.f32 1.5, %v122
    %v124 = vmul.f32 %v119, %v123
    %vm125 = vweird.f32 %v117
    %vm126 = vweird.f32 %v119
    %vm127 = vmor %vm125, %vm126
    %v128 = vsel %vm127, %v119, %v124
    %v129 = vrsqrt.pop %v118
    %v130 = vmul.f32 %v129, %v118
    %v131 = vmul.f32 %v130, %v129
    %v132 = vmul.f32 0.5, %v131
    %v133 = vsub.f32 1.5, %v132
    %v134 = vmul.f32 %v129, %v133
    %vm135 = vweird.f32 %v118
    %vm136 = vweird.f32 %v129
    %vm137 = vmor %vm135, %vm136
    %v138 = vsel %vm137, %v129, %v134
    %v139 = vmul.f32 %v99, %v128
    %v140 = vmul.f32 %v100, %v138
    %v141 = vmax.f32 %v139, 0.0
    %v142 = vmax.f32 %v140, 0.0
    %v143 = vpack.c.bf16 %v142, %v141
    %v144 = vld [vmem:[#allocation2] sm:$0xff]
    %v145 = vld [vmem:[#allocation2 + $0x8] sm:$0xff]
    %v146 = vld [vmem:[#allocation2 + $0x10] sm:$0xff]
    %v147 = vld [vmem:[#allocation2 + $0x18] sm:$0xff]
    %v148 = vld [vmem:[#allocation2 + $0x20] sm:$0xff]
    %v149 = vld [vmem:[#allocation2 + $0x28] sm:$0xff]
    %v150 = vld [vmem:[#allocation2 + $0x30] sm:$0xff]
    %v151 = vld [vmem:[#allocation2 + $0x38] sm:$0xff]
    %v152 = vld [vmem:[#allocation2 + $0x40] sm:$0xff]
    %v153 = vld [vmem:[#allocation2 + $0x48] sm:$0xff]
    %v154 = vld [vmem:[#allocation2 + $0x50] sm:$0xff]
    %v155 = vld [vmem:[#allocation2 + $0x58] sm:$0xff]
    %v156 = vld [vmem:[#allocation2 + $0x60] sm:$0xff]
    %v157 = vld [vmem:[#allocation2 + $0x68] sm:$0xff]
    %v158 = vld [vmem:[#allocation2 + $0x70] sm:$0xff]
    %v159 = vld [vmem:[#allocation2 + $0x78] sm:$0xff]
    %v160 = vpack.c.bf16 %v145, %v144
    %v161 = vpack.c.bf16 %v147, %v146
    %v162 = vpack.c.bf16 %v149, %v148
    %v163 = vpack.c.bf16 %v151, %v150
    %v164 = vpack.c.bf16 %v153, %v152
    %v165 = vpack.c.bf16 %v155, %v154
    %v166 = vpack.c.bf16 %v157, %v156
    %v167 = vpack.c.bf16 %v159, %v158
    %168 = vmatpush.bf16.msra.mxu0 %v167
    %169 = vmatpush.bf16.msra.mxu0 %v166
    %170 = vmatpush.bf16.msra.mxu0 %v165
    %171 = vmatpush.bf16.msra.mxu0 %v164
    %172 = vmatpush.bf16.msra.mxu0 %v163
    %173 = vmatpush.bf16.msra.mxu0 %v162
    %174 = vmatpush.bf16.msra.mxu0 %v161
    %175 = vmatpush.bf16.msra.mxu0 %v160
    %176 = vmatmul.bf16.gmra.mxu0 %v143
    %v177 = vpop.f32.mrf.mxu0
    %v178 = vadd.f32 0.0, %v177
    %v179 = vpop.f32.mrf.mxu0
    %v180 = vadd.f32 0.0, %v179
    %181 = vdwg.mxu0
    %v182 = vrot.slane %v178, 4
    %v183 = vadd.f32 %v178, %v182
    %v184 = vrot.slane %v183, 2
    %v185 = vadd.f32 %v183, %v184
    %v186 = vrot.slane %v185, 1
    %v187 = vadd.f32 %v185, %v186
    %v188 = vrot.slane %v180, 4
    %v189 = vadd.f32 %v180, %v188
    %v190 = vrot.slane %v189, 2
    %v191 = vadd.f32 %v189, %v190
    %v192 = vrot.slane %v191, 1
    %v193 = vadd.f32 %v191, %v192
    %v194 = vmul.f32 %v187, %v96
    %v195 = vmul.f32 %v193, %v96
    %v196 = vsub.f32 %v178, %v194
    %v197 = vsub.f32 %v180, %v195
    %v198 = vmul.f32 %v196, %v196
    %v199 = vmul.f32 %v197, %v197
    %v200 = vrot.slane %v198, 4
    %v201 = vadd.f32 %v198, %v200
    %v202 = vrot.slane %v201, 2
    %v203 = vadd.f32 %v201, %v202
    %v204 = vrot.slane %v203, 1
    %v205 = vadd.f32 %v203, %v204
    %v206 = vrot.slane %v199, 4
    %v207 = vadd.f32 %v199, %v206
    %v208 = vrot.slane %v207, 2
    %v209 = vadd.f32 %v207, %v208
    %v210 = vrot.slane %v209, 1
    %v211 = vadd.f32 %v209, %v210
    %v212 = vmul.f32 %v205, %v96
    %v213 = vmul.f32 %v211, %v96
    %v214 = vadd.f32 %v212, 1e-05
    %v215 = vadd.f32 %v213, 1e-05
    %v216 = vrsqrt.pop %v214
    %v217 = vmul.f32 %v216, %v214
    %v218 = vmul.f32 %v217, %v216
    %v219 = vmul.f32 0.5, %v218
    %v220 = vsub.f32 1.5, %v219
    %v221 = vmul.f32 %v216, %v220
    %vm222 = vweird.f32 %v214
    %vm223 = vweird.f32 %v216
    %vm224 = vmor %vm222, %vm223
    %v225 = vsel %vm224, %v216, %v221
    %v226 = vrsqrt.pop %v215
    %v227 = vmul.f32 %v226, %v215
    %v228 = vmul.f32 %v227, %v226
    %v229 = vmul.f32 0.5, %v228
    %v230 = vsub.f32 1.5, %v229
    %v231 = vmul.f32 %v226, %v230
    %vm232 = vweird.f32 %v215
    %vm233 = vweird.f32 %v226
    %vm234 = vmor %vm232, %vm233
    %v235 = vsel %vm234, %v226, %v231
    %v236 = vmul.f32 %v196, %v225
    %v237 = vmul.f32 %v197, %v235
    %v238 = vmax.f32 %v236, 0.0
    %v239 = vmax.f32 %v237, 0.0
    %v240 = vpack.c.bf16 %v239, %v238
    %v241 = vld [vmem:[#allocation5] sm:$0xff]
    %v242 = vld [vmem:[#allocation5 + $0x8] sm:$0xff]
    %v243 = vld [vmem:[#allocation5 + $0x10] sm:$0xff]
    %v244 = vld [vmem:[#allocation5 + $0x18] sm:$0xff]
    %v245 = vld [vmem:[#allocation5 + $0x20] sm:$0xff]
    %v246 = vld [vmem:[#allocation5 + $0x28] sm:$0xff]
    %v247 = vld [vmem:[#allocation5 + $0x30] sm:$0xff]
    %v248 = vld [vmem:[#allocation5 + $0x38] sm:$0xff]
    %v249 = vld [vmem:[#allocation5 + $0x40] sm:$0xff]
    %v250 = vld [vmem:[#allocation5 + $0x48] sm:$0xff]
    %v251 = vld [vmem:[#allocation5 + $0x50] sm:$0xff]
    %v252 = vld [vmem:[#allocation5 + $0x58] sm:$0xff]
    %v253 = vld [vmem:[#allocation5 + $0x60] sm:$0xff]
    %v254 = vld [vmem:[#allocation5 + $0x68] sm:$0xff]
    %v255 = vld [vmem:[#allocation5 + $0x70] sm:$0xff]
    %v256 = vld [vmem:[#allocation5 + $0x78] sm:$0xff]
    %v257 = vpack.c.bf16 %v242, %v241
    %v258 = vpack.c.bf16 %v244, %v243
    %v259 = vpack.c.bf16 %v246, %v245
    %v260 = vpack.c.bf16 %v248, %v247
    %v261 = vpack.c.bf16 %v250, %v249
    %v262 = vpack.c.bf16 %v252, %v251
    %v263 = vpack.c.bf16 %v254, %v253
    %v264 = vpack.c.bf16 %v256, %v255
    %265 = vmatpush.bf16.msra.mxu0 %v264
    %266 = vmatpush.bf16.msra.mxu0 %v263
    %267 = vmatpush.bf16.msra.mxu0 %v262
    %268 = vmatpush.bf16.msra.mxu0 %v261
    %269 = vmatpush.bf16.msra.mxu0 %v260
    %270 = vmatpush.bf16.msra.mxu0 %v259
    %271 = vmatpush.bf16.msra.mxu0 %v258
    %272 = vmatpush.bf16.msra.mxu0 %v257
    %273 = vmatmul.bf16.gmra.mxu0 %v240
    %v274 = vpop.f32.mrf.mxu0
    %v275 = vadd.f32 0.0, %v274
    %v276 = vpop.f32.mrf.mxu0
    %v277 = vadd.f32 0.0, %v276
    %278 = vdwg.mxu0
    %v279 = vrot.slane %v275, 4
    %v280 = vadd.f32 %v275, %v279
    %v281 = vrot.slane %v280, 2
    %v282 = vadd.f32 %v280, %v281
    %v283 = vrot.slane %v282, 1
    %v284 = vadd.f32 %v282, %v283
    %v285 = vrot.slane %v277, 4
    %v286 = vadd.f32 %v277, %v285
    %v287 = vrot.slane %v286, 2
    %v288 = vadd.f32 %v286, %v287
    %v289 = vrot.slane %v288, 1
    %v290 = vadd.f32 %v288, %v289
    %v291 = vmul.f32 %v284, %v96
    %v292 = vmul.f32 %v290, %v96
    %v293 = vsub.f32 %v275, %v291
    %v294 = vsub.f32 %v277, %v292
    %v295 = vmul.f32 %v293, %v293
    %v296 = vmul.f32 %v294, %v294
    %v297 = vrot.slane %v295, 4
    %v298 = vadd.f32 %v295, %v297
    %v299 = vrot.slane %v298, 2
    %v300 = vadd.f32 %v298, %v299
    %v301 = vrot.slane %v300, 1
    %v302 = vadd.f32 %v300, %v301
    %v303 = vrot.slane %v296, 4
    %v304 = vadd.f32 %v296, %v303
    %v305 = vrot.slane %v304, 2
    %v306 = vadd.f32 %v304, %v305
    %v307 = vrot.slane %v306, 1
    %v308 = vadd.f32 %v306, %v307
    %v309 = vmul.f32 %v302, %v96
    %v310 = vmul.f32 %v308, %v96
    %v311 = vadd.f32 %v309, 1e-05
    %v312 = vadd.f32 %v310, 1e-05
    %v313 = vrsqrt.pop %v311
    %v314 = vmul.f32 %v313, %v311
    %v315 = vmul.f32 %v314, %v313
    %v316 = vmul.f32 0.5, %v315
    %v317 = vsub.f32 1.5, %v316
    %v318 = vmul.f32 %v313, %v317
    %vm319 = vweird.f32 %v311
    %vm320 = vweird.f32 %v313
    %vm321 = vmor %vm319, %vm320
    %v322 = vsel %vm321, %v313, %v318
    %v323 = vrsqrt.pop %v312
    %v324 = vmul.f32 %v323, %v312
    %v325 = vmul.f32 %v324, %v323
    %v326 = vmul.f32 0.5, %v325
    %v327 = vsub.f32 1.5, %v326
    %v328 = vmul.f32 %v323, %v327
    %vm329 = vweird.f32 %v312
    %vm330 = vweird.f32 %v323
    %vm331 = vmor %vm329, %vm330
    %v332 = vsel %vm331, %v323, %v328
    %v333 = vmul.f32 %v293, %v322
    %v334 = vmul.f32 %v294, %v332
    %v335 = vpack.c.bf16 %v333, %v333
    %v336 = vpack.c.bf16 %v334, %v334
    %337 = vxpose.xlu0.c.b16.start [1/8] %v335, 128
    %338 = vxpose.xlu0.c.b16.cont [2/8] 0, 128
    %339 = vxpose.xlu0.c.b16.cont [3/8] 0, 128
    %340 = vxpose.xlu0.c.b16.cont [4/8] 0, 128
    %341 = vxpose.xlu0.c.b16.cont [5/8] 0, 128
    %342 = vxpose.xlu0.c.b16.cont [6/8] 0, 128
    %343 = vxpose.xlu0.c.b16.cont [7/8] 0, 128
    %344 = vxpose.xlu0.c.b16.end [8/8] 0, 128
    %v345 = vpop.trf.xlu0
    %v346 = vpop.trf.xlu0
    %v347 = vpop.trf.xlu0
    %v348 = vpop.trf.xlu0
    %v349 = vpop.trf.xlu0
    %v350 = vpop.trf.xlu0
    %v351 = vpop.trf.xlu0
    %v352 = vpop.trf.xlu0
    %vm353 = vcmask 64512
    %v355 = vsel %vm353, %v345, 0
    %v358 = vsel %vm353, %v346, 0
    %v361 = vsel %vm353, %v347, 0
    %v364 = vsel %vm353, %v348, 0
    %v367 = vsel %vm353, %v349, 0
    %v370 = vsel %vm353, %v350, 0
    %v373 = vsel %vm353, %v351, 0
    %v376 = vsel %vm353, %v352, 0
    %vm378 = vcmask 1043456
    %v380 = vsel %vm378, %v336, 0
    %382 = vmatpush.bf16.msra.mxu0 0
    %383 = vmatpush.bf16.msra.mxu0 0
    %384 = vmatpush.bf16.msra.mxu0 0
    %385 = vmatpush.bf16.msra.mxu0 0
    %386 = vmatpush.bf16.msra.mxu0 0
    %387 = vmatpush.bf16.msra.mxu0 0
    %388 = vmatpush.bf16.msra.mxu0 0
    %389 = vmatpush.bf16.msra.mxu0 %v380
    %390 = vmatmul.bf16.gmra.mxu0 %v355
    %v391 = vpop.f32.mrf.mxu0
    %v392 = vadd.f32 0.0, %v391
    %v393 = vpop.f32.mrf.mxu0
    %v394 = vadd.f32 0.0, %v393
    %395 = vmatmul.bf16.gmra.mxu0 %v358
    %v396 = vpop.f32.mrf.mxu0
    %v397 = vadd.f32 0.0, %v396
    %v398 = vpop.f32.mrf.mxu0
    %v399 = vadd.f32 0.0, %v398
    %400 = vmatmul.bf16.gmra.mxu0 %v361
    %v401 = vpop.f32.mrf.mxu0
    %v402 = vadd.f32 0.0, %v401
    %v403 = vpop.f32.mrf.mxu0
    %v404 = vadd.f32 0.0, %v403
    %405 = vmatmul.bf16.gmra.mxu0 %v364
    %v406 = vpop.f32.mrf.mxu0
    %v407 = vadd.f32 0.0, %v406
    %v408 = vpop.f32.mrf.mxu0
    %v409 = vadd.f32 0.0, %v408
    %410 = vmatmul.bf16.gmra.mxu0 %v367
    %v411 = vpop.f32.mrf.mxu0
    %v412 = vadd.f32 0.0, %v411
    %v413 = vpop.f32.mrf.mxu0
    %v414 = vadd.f32 0.0, %v413
    %415 = vmatmul.bf16.gmra.mxu0 %v370
    %v416 = vpop.f32.mrf.mxu0
    %v417 = vadd.f32 0.0, %v416
    %v418 = vpop.f32.mrf.mxu0
    %v419 = vadd.f32 0.0, %v418
    %420 = vmatmul.bf16.gmra.mxu0 %v373
    %v421 = vpop.f32.mrf.mxu0
    %v422 = vadd.f32 0.0, %v421
    %v423 = vpop.f32.mrf.mxu0
    %v424 = vadd.f32 0.0, %v423
    %425 = vmatmul.bf16.gmra.mxu0 %v376
    %v426 = vpop.f32.mrf.mxu0
    %v427 = vadd.f32 0.0, %v426
    %v428 = vpop.f32.mrf.mxu0
    %v429 = vadd.f32 0.0, %v428
    %430 = vdwg.mxu0
    %v431 = vmul.f32 %v392, 0.125
    %v432 = vmul.f32 %v394, 0.125
    %v433 = vmul.f32 %v397, 0.125
    %v434 = vmul.f32 %v399, 0.125
    %v435 = vmul.f32 %v402, 0.125
    %v436 = vmul.f32 %v404, 0.125
    %v437 = vmul.f32 %v407, 0.125
    %v438 = vmul.f32 %v409, 0.125
    %v439 = vmul.f32 %v412, 0.125
    %v440 = vmul.f32 %v414, 0.125
    %v441 = vmul.f32 %v417, 0.125
    %v442 = vmul.f32 %v419, 0.125
    %v443 = vmul.f32 %v422, 0.125
    %v444 = vmul.f32 %v424, 0.125
    %v445 = vmul.f32 %v427, 0.125
    %v446 = vmul.f32 %v429, 0.125
    %v447 = vunpack.c.l.bf16 %v335
    %v448 = vunpack.c.l.bf16 %v336
    %v449 = vmul.f32 %v447, %v448
    %v450 = vrot.slane %v449, 4
    %v451 = vadd.f32 %v449, %v450
    %v452 = vrot.slane %v451, 2
    %v453 = vadd.f32 %v451, %v452
    %v454 = vrot.slane %v453, 1
    %v455 = vadd.f32 %v453, %v454
    %v456 = vmul.f32 %v455, 0.125
    %v457 = vmul.f32 %v431, %v431
    %v458 = vmul.f32 %v432, %v432
    %v459 = vmul.f32 %v433, %v433
    %v460 = vmul.f32 %v434, %v434
    %v461 = vmul.f32 %v435, %v435
    %v462 = vmul.f32 %v436, %v436
    %v463 = vmul.f32 %v437, %v437
    %v464 = vmul.f32 %v438, %v438
    %v465 = vmul.f32 %v439, %v439
    %v466 = vmul.f32 %v440, %v440
    %v467 = vmul.f32 %v441, %v441
    %v468 = vmul.f32 %v442, %v442
    %v469 = vmul.f32 %v443, %v443
    %v470 = vmul.f32 %v444, %v444
    %v471 = vmul.f32 %v445, %v445
    %v472 = vmul.f32 %v446, %v446
    %v473 = vadd.f32 %v457, %v458
    %v474 = vadd.f32 %v473, %v459
    %v475 = vadd.f32 %v474, %v460
    %v476 = vadd.f32 %v475, %v461
    %v477 = vadd.f32 %v476, %v462
    %v478 = vadd.f32 %v477, %v463
    %v479 = vadd.f32 %v478, %v464
    %v480 = vadd.f32 %v479, %v465
    %v481 = vadd.f32 %v480, %v466
    %v482 = vadd.f32 %v481, %v467
    %v483 = vadd.f32 %v482, %v468
    %v484 = vadd.f32 %v483, %v469
    %v485 = vadd.f32 %v484, %v470
    %v486 = vadd.f32 %v485, %v471
    %v487 = vadd.f32 %v486, %v472
    %488 = vadd.xlane.f32.xlu0 %v487
    %v489 = vpop.xlane.xlu0 %488
    %v490 = vrot.slane %v489, 4
    %v491 = vadd.f32 %v489, %v490
    %v492 = vrot.slane %v491, 2
    %v493 = vadd.f32 %v491, %v492
    %v494 = vrot.slane %v493, 1
    %v495 = vadd.f32 %v493, %v494
    %s496 = vtos %v495
    %v497 = vsub.f32 %v456, 1.0
    %v498 = vmul.f32 %v497, %v497
    %vm499 = vcmask 1040384
    %v500 = vsel %vm499, %v498, 0.0
    %501 = vadd.xlane.f32.xlu0 %v500
    %v502 = vpop.xlane.xlu0 %501
    %v503 = vrot.slane %v502, 4
    %v504 = vadd.f32 %v502, %v503
    %v505 = vrot.slane %v504, 2
    %v506 = vadd.f32 %v504, %v505
    %v507 = vrot.slane %v506, 1
    %v508 = vadd.f32 %v506, %v507
    %s509 = vtos %v508
    %v510 = vmul.f32 %v456, %v456
    %v511 = vsel %vm499, %v510, 0.0
    %512 = vadd.xlane.f32.xlu0 %v511
    %v513 = vpop.xlane.xlu0 %512
    %v514 = vrot.slane %v513, 4
    %v515 = vadd.f32 %v513, %v514
    %v516 = vrot.slane %v515, 2
    %v517 = vadd.f32 %v515, %v516
    %v518 = vrot.slane %v517, 1
    %v519 = vadd.f32 %v517, %v518
    %s520 = vtos %v519
    %s521 = ssub.f32 %s496, %s520
    %v522 = vrcp.pop 128.0
    %v523 = vmul.f32 128.0, %v522
    %v524 = vsub.f32 1.0, %v523
    %v525 = vmul.f32 %v522, %v524
    %v526 = vadd.f32 %v522, %v525
    %vm527 = vweird.f32 %v522
    %v528 = vsel %vm527, %v522, %v526
    %s529 = vtos %v528
    %s530 = smul.f32 %s509, %s529
    %v531 = vrcp.pop 128.0
    %v532 = vmul.f32 128.0, %v531
    %v533 = vsub.f32 1.0, %v532
    %v534 = vmul.f32 %v531, %v533
    %v535 = vadd.f32 %v531, %v534
    %vm536 = vweird.f32 %v531
    %v537 = vsel %vm536, %v531, %v535
    %s538 = vtos %v537
    %s539 = smul.f32 %s521, %s538
    %s540 = smul.f32 %s539, 0.005
    %s541 = sadd.f32 %s530, %s540
    %s542 = scalar_lea.smem [#allocation7], 0
    %543 = sst [smem:[%s542]] %s541
    // Predicated region
    $region26: #{barlow_twins_loss.1} parent=1 // pred_check
      _
    $region27: #{barlow_twins_loss.1} parent=1 // pred_check_branch
      %545 = sbr.rel (0) target = $region29
    $region28: #{barlow_twins_loss.1} parent=1 // pred_region
      %547 = vsyncadd [#allocation4], 0
      %s549 = sshll.u32 %s4, 4
      %s550 = int_to_ptr.hbm [resolvable:$true] %s549
      %552 = dma.smem_to_hbm [#allocation7], 16, %s550, [#allocation4]
    $region29: #{barlow_twins_loss.1} parent=1 // pred_fallthru
      _
    // Predicated region
    $region30: #{barlow_twins_loss.1} parent=1 // pred_check
      _
    $region31: #{barlow_twins_loss.1} parent=1 // pred_check_branch
      %554 = sbr.rel (0) target = $region33
    $region32: #{barlow_twins_loss.1} parent=1 // pred_region
      %556 = dma.done [#allocation4], 16
    $region33: #{barlow_twins_loss.1} parent=1 // pred_fallthru
      _
    %557 = sfence
    %558 = vsyncpa [#allocation3], 1
    %559 = vsyncpa [#allocation6], 1
    %560 = vsyncpa [#allocation4], 1

</llo_original>
